<compile_context>
chip_gen: v5e
topology: v5e:2x2
jax: 0.10.0
libtpu: 0.0.40
codegen_flags: <defaults>
</compile_context>

<pallas_src>
import jax
import jax.numpy as jnp
from jax.experimental import pallas as pl
from jax.experimental.pallas import tpu as pltpu

# (in_features, out_features) per layer, matching torch MLP_Net.
LAYER_DIMS = ((2, 5), (5, 5), (5, 5), (5, 5), (5, 5), (5, 1))
N_LAYERS = len(LAYER_DIMS)
FPAD = 8  # feature padding (sublane width); every layer width is <= 8


def _vmem_capacity_bytes():
    try:
        info = pltpu.get_tpu_info()
        cap = getattr(info, "vmem_capacity_bytes", None)
        if cap:
            return int(cap)
    except Exception:
        pass
    return 64 << 20  # conservative fallback: v7x per-TensorCore VMEM


_VMEM_BYTES = _vmem_capacity_bytes()
# Explicit scoped-VMEM limit (v5e default is only 16 MiB; v7x physical is 64 MiB).
VMEM_LIMIT_BYTES = int(min(_VMEM_BYTES // 2, 64 << 20))
# ~384 B of VMEM per lane: 3 I/O streams x 2 buffers x 8 sublanes x 4 B (=192*T) plus
# ~192*T for (8,T) f32 intermediates.  Keep that inside half the scoped limit.
_BYTES_PER_LANE = 384
MAX_TILE_N = max(128, min(64 * 1024,
                          ((VMEM_LIMIT_BYTES // 2) // _BYTES_PER_LANE) // 128 * 128))


def _mlp_kernel(x_ref, t_ref, w_ref, b_ref, o_ref):
    """Feature-major MLP forward on one batch tile.

    x_ref, t_ref : (1, TILE_N)   lane-dense input rows (x and t)
    w_ref        : (6, 8, 8)     zero-padded torch-layout weights W[l][out, in]
    b_ref        : (6, 8, 1)     zero-padded biases
    o_ref        : (1, TILE_N)   lane-dense output row
    """

    def sigmoid(z):
        # Single EUP transcendental (tanh) per element; avoids exp + divide.
        return 0.5 * jnp.tanh(0.5 * z) + 0.5

    def dense(rows, layer):
        # h_new[o, n] = b[o] + sum_i W[o, i] * rows[i][n]  -- outer-product VPU FMAs.
        wl = w_ref[layer]                       # (8, 8); padded rows/cols are 0
        bl = b_ref[layer]                       # (8, 1)
        acc = wl[:, 0:1] * rows[0] + bl         # (8,1)*(1,T)+(8,1) -> (8, T)
        for i in range(1, len(rows)):
            acc = acc + wl[:, i:i + 1] * rows[i]
        return acc

    # Layer 1: the two input features are the lane-dense x / t rows.
    h = sigmoid(dense([x_ref[...], t_ref[...]], 0))
    # Hidden layers 2..5: padded rows of h hold sigmoid(0)=0.5 but the matching weight
    # columns are zero, so they never contribute.
    for layer in range(1, N_LAYERS - 1):
        in_dim = LAYER_DIMS[layer][0]
        h = sigmoid(dense([h[i:i + 1, :] for i in range(in_dim)], layer))
    # Output layer: no activation; only row 0 is real.
    out = dense([h[i:i + 1, :] for i in range(LAYER_DIMS[-1][0])], N_LAYERS - 1)
    o_ref[...] = out[0:1, :]


def pack_params(params):
    """Pad torch-layout params (W:(out,in), b:(out,)) ONCE into packed slabs."""
    w_all = jnp.zeros((N_LAYERS, FPAD, FPAD), jnp.float32)
    b_all = jnp.zeros((N_LAYERS, FPAD, 1), jnp.float32)
    for l, (W, b) in enumerate(params):
        dout, din = W.shape
        w_all = w_all.at[l, :dout, :din].set(W.astype(jnp.float32))
        b_all = b_all.at[l, :dout, 0].set(b.astype(jnp.float32))
    return w_all, b_all


@jax.jit
def mlp_net_forward(x, t, w_packed, b_packed):
    """x: (N, 1), t: (N, 1) float32 -> (N, 1) float32 (matches MLP_Net.forward)."""
    n = x.shape[0]

    # Zero-copy feature-major views: (N,1) -> (1,N) is a contiguous reshape (no extra
    # HBM pass).  Only N < 128 pads up to one lane tile (a few hundred bytes).
    x_row = x.astype(jnp.float32).reshape(1, n)
    t_row = t.astype(jnp.float32).reshape(1, n)
    if n < 128:
        x_row = jnp.pad(x_row, ((0, 0), (0, 128 - n)))
        t_row = jnp.pad(t_row, ((0, 0), (0, 128 - n)))
    n_eff = max(n, 128)

    # Batch tile: >= 2 grid steps when possible (megacore sharding on v7x), never above
    # the VMEM-derived cap, always a multiple of 128 lanes and <= n_eff.
    half = pl.cdiv(pl.cdiv(n_eff, 2), 128) * 128
    tile_n = min(MAX_TILE_N, half)
    num_tiles = pl.cdiv(n_eff, tile_n)

    io_spec = pl.BlockSpec((1, tile_n), lambda i: (0, i))
    w_spec = pl.BlockSpec((N_LAYERS, FPAD, FPAD), lambda i: (0, 0, 0))  # VMEM-resident
    b_spec = pl.BlockSpec((N_LAYERS, FPAD, 1), lambda i: (0, 0, 0))     # VMEM-resident

    out_row = pl.pallas_call(
        _mlp_kernel,
        grid=(num_tiles,),
        out_shape=jax.ShapeDtypeStruct((1, n_eff), jnp.float32),
        in_specs=[io_spec, io_spec, w_spec, b_spec],
        out_specs=io_spec,
        compiler_params=pltpu.CompilerParams(
            dimension_semantics=("parallel",),
            vmem_limit_bytes=VMEM_LIMIT_BYTES),
    )(x_row, t_row, w_packed, b_packed)

    return out_row[:, :n].reshape(n, 1)


def init_params(key):
    """Deterministic init matching MLP_Net's layer shapes (torch (out,in) layout)."""
    params = []
    for i, (din, dout) in enumerate(LAYER_DIMS):
        kw, kb, key = jax.random.split(jax.random.fold_in(key, i), 3)
        bound = 1.0 / (din ** 0.5)
        W = jax.random.uniform(kw, (dout, din), jnp.float32, -bound, bound)
        b = jax.random.uniform(kb, (dout,), jnp.float32, -bound, bound)
        params.append((W, b))
    return params


def mlp_net_reference(x, t, params):
    """Pure-JAX (batch-major) reference for correctness checking."""
    h = jnp.concatenate([x, t], axis=1)
    for i, (W, b) in enumerate(params):
        h = h @ W.T + b
        if i < len(params) - 1:
            h = jax.nn.sigmoid(h)
    return h


if __name__ == "__main__":
    key = jax.random.PRNGKey(0)
    kx, kt, kp = jax.random.split(key, 3)

    params = init_params(kp)
    w_packed, b_packed = pack_params(params)   # padded once, outside the call path

    # batch=8: tiny-batch path (single padded lane tile);
    # batch=1200: zero-copy path, 2-step grid with a ragged, pipeline-masked tail tile.
    for batch in (8, 1200):
        x = jax.random.normal(jax.random.fold_in(kx, batch), (batch, 1), jnp.float32)
        t = jax.random.normal(jax.random.fold_in(kt, batch), (batch, 1), jnp.float32)

        out = mlp_net_forward(x, t, w_packed, b_packed)
        jax.block_until_ready(out)

        ref = mlp_net_reference(x, t, params)
        assert out.shape == (batch, 1), out.shape
        assert jnp.allclose(out, ref, atol=1e-5, rtol=1e-5), (out, ref)

    print("KERNEL_OK")
</pallas_src>

<mosaic_0001>
module attributes {stable_mosaic.version = 11 : i64} {
  func.func @_mlp_kernel(%arg0: i32, %arg1: memref<1x128xf32, #tpu.memory_space<vmem>>, %arg2: memref<1x128xf32, #tpu.memory_space<vmem>>, %arg3: memref<6x8x8xf32, #tpu.memory_space<vmem>>, %arg4: memref<6x8x1xf32, #tpu.memory_space<vmem>>, %arg5: memref<1x128xf32, #tpu.memory_space<vmem>>) attributes {dimension_semantics = [#tpu.dimension_semantics<parallel>], iteration_bounds = array<i64: 1>, scalar_prefetch = 0 : i64, scratch_operands = 0 : i64, tpu.core_type = #tpu.core_type<tc>, window_params = [{transform_indices = @transform_0, window_bounds = array<i64: 1, 128>}, {transform_indices = @transform_1, window_bounds = array<i64: 1, 128>}, {pipeline_mode = #tpu.pipeline_mode<synchronous>, transform_indices = @transform_2, window_bounds = array<i64: 6, 8, 8>}, {pipeline_mode = #tpu.pipeline_mode<synchronous>, transform_indices = @transform_3, window_bounds = array<i64: 6, 8, 1>}, {transform_indices = @transform_4, window_bounds = array<i64: 1, 128>}]} {
    %c0 = arith.constant 0 : index
    %c0_0 = arith.constant 0 : index
    %0 = vector.load %arg1[%c0, %c0_0] : memref<1x128xf32, #tpu.memory_space<vmem>>, vector<1x128xf32>
    %c0_1 = arith.constant 0 : index
    %c0_2 = arith.constant 0 : index
    %1 = vector.load %arg2[%c0_1, %c0_2] : memref<1x128xf32, #tpu.memory_space<vmem>>, vector<1x128xf32>
    %c0_3 = arith.constant 0 : index
    %c0_4 = arith.constant 0 : index
    %c0_5 = arith.constant 0 : index
    %2 = vector.load %arg3[%c0_3, %c0_4, %c0_5] : memref<6x8x8xf32, #tpu.memory_space<vmem>>, vector<1x8x8xf32>
    %3 = vector.shape_cast %2 : vector<1x8x8xf32> to vector<8x8xf32>
    %c0_6 = arith.constant 0 : index
    %c0_7 = arith.constant 0 : index
    %c0_8 = arith.constant 0 : index
    %4 = vector.load %arg4[%c0_6, %c0_7, %c0_8] : memref<6x8x1xf32, #tpu.memory_space<vmem>>, vector<1x8x1xf32>
    %5 = vector.shape_cast %4 : vector<1x8x1xf32> to vector<8x1xf32>
    %6 = vector.extract_strided_slice %3 {offsets = [0, 0], sizes = [8, 1], strides = [1, 1]} : vector<8x8xf32> to vector<8x1xf32>
    %7 = vector.broadcast %6 : vector<8x1xf32> to vector<8x128xf32>
    %8 = vector.broadcast %0 : vector<1x128xf32> to vector<8x128xf32>
    %9 = arith.mulf %7, %8 : vector<8x128xf32>
    %10 = vector.broadcast %5 : vector<8x1xf32> to vector<8x128xf32>
    %11 = arith.addf %9, %10 : vector<8x128xf32>
    %12 = vector.extract_strided_slice %3 {offsets = [0, 1], sizes = [8, 1], strides = [1, 1]} : vector<8x8xf32> to vector<8x1xf32>
    %13 = vector.broadcast %12 : vector<8x1xf32> to vector<8x128xf32>
    %14 = vector.broadcast %1 : vector<1x128xf32> to vector<8x128xf32>
    %15 = arith.mulf %13, %14 : vector<8x128xf32>
    %16 = arith.addf %11, %15 : vector<8x128xf32>
    %cst = arith.constant 5.000000e-01 : f32
    %17 = vector.broadcast %cst : f32 to vector<8x128xf32>
    %18 = arith.mulf %17, %16 : vector<8x128xf32>
    %19 = math.tanh %18 : vector<8x128xf32>
    %cst_9 = arith.constant 5.000000e-01 : f32
    %20 = vector.broadcast %cst_9 : f32 to vector<8x128xf32>
    %21 = arith.mulf %20, %19 : vector<8x128xf32>
    %cst_10 = arith.constant 5.000000e-01 : f32
    %22 = vector.broadcast %cst_10 : f32 to vector<8x128xf32>
    %23 = arith.addf %21, %22 : vector<8x128xf32>
    %24 = vector.extract_strided_slice %23 {offsets = [0, 0], sizes = [1, 128], strides = [1, 1]} : vector<8x128xf32> to vector<1x128xf32>
    %25 = vector.extract_strided_slice %23 {offsets = [1, 0], sizes = [1, 128], strides = [1, 1]} : vector<8x128xf32> to vector<1x128xf32>
    %26 = vector.extract_strided_slice %23 {offsets = [2, 0], sizes = [1, 128], strides = [1, 1]} : vector<8x128xf32> to vector<1x128xf32>
    %27 = vector.extract_strided_slice %23 {offsets = [3, 0], sizes = [1, 128], strides = [1, 1]} : vector<8x128xf32> to vector<1x128xf32>
    %28 = vector.extract_strided_slice %23 {offsets = [4, 0], sizes = [1, 128], strides = [1, 1]} : vector<8x128xf32> to vector<1x128xf32>
    %c1 = arith.constant 1 : index
    %c0_11 = arith.constant 0 : index
    %c0_12 = arith.constant 0 : index
    %29 = vector.load %arg3[%c1, %c0_11, %c0_12] : memref<6x8x8xf32, #tpu.memory_space<vmem>>, vector<1x8x8xf32>
    %30 = vector.shape_cast %29 : vector<1x8x8xf32> to vector<8x8xf32>
    %c1_13 = arith.constant 1 : index
    %c0_14 = arith.constant 0 : index
    %c0_15 = arith.constant 0 : index
    %31 = vector.load %arg4[%c1_13, %c0_14, %c0_15] : memref<6x8x1xf32, #tpu.memory_space<vmem>>, vector<1x8x1xf32>
    %32 = vector.shape_cast %31 : vector<1x8x1xf32> to vector<8x1xf32>
    %33 = vector.extract_strided_slice %30 {offsets = [0, 0], sizes = [8, 1], strides = [1, 1]} : vector<8x8xf32> to vector<8x1xf32>
    %34 = vector.broadcast %33 : vector<8x1xf32> to vector<8x128xf32>
    %35 = vector.broadcast %24 : vector<1x128xf32> to vector<8x128xf32>
    %36 = arith.mulf %34, %35 : vector<8x128xf32>
    %37 = vector.broadcast %32 : vector<8x1xf32> to vector<8x128xf32>
    %38 = arith.addf %36, %37 : vector<8x128xf32>
    %39 = vector.extract_strided_slice %30 {offsets = [0, 1], sizes = [8, 1], strides = [1, 1]} : vector<8x8xf32> to vector<8x1xf32>
    %40 = vector.broadcast %39 : vector<8x1xf32> to vector<8x128xf32>
    %41 = vector.broadcast %25 : vector<1x128xf32> to vector<8x128xf32>
    %42 = arith.mulf %40, %41 : vector<8x128xf32>
    %43 = arith.addf %38, %42 : vector<8x128xf32>
    %44 = vector.extract_strided_slice %30 {offsets = [0, 2], sizes = [8, 1], strides = [1, 1]} : vector<8x8xf32> to vector<8x1xf32>
    %45 = vector.broadcast %44 : vector<8x1xf32> to vector<8x128xf32>
    %46 = vector.broadcast %26 : vector<1x128xf32> to vector<8x128xf32>
    %47 = arith.mulf %45, %46 : vector<8x128xf32>
    %48 = arith.addf %43, %47 : vector<8x128xf32>
    %49 = vector.extract_strided_slice %30 {offsets = [0, 3], sizes = [8, 1], strides = [1, 1]} : vector<8x8xf32> to vector<8x1xf32>
    %50 = vector.broadcast %49 : vector<8x1xf32> to vector<8x128xf32>
    %51 = vector.broadcast %27 : vector<1x128xf32> to vector<8x128xf32>
    %52 = arith.mulf %50, %51 : vector<8x128xf32>
    %53 = arith.addf %48, %52 : vector<8x128xf32>
    %54 = vector.extract_strided_slice %30 {offsets = [0, 4], sizes = [8, 1], strides = [1, 1]} : vector<8x8xf32> to vector<8x1xf32>
    %55 = vector.broadcast %54 : vector<8x1xf32> to vector<8x128xf32>
    %56 = vector.broadcast %28 : vector<1x128xf32> to vector<8x128xf32>
    %57 = arith.mulf %55, %56 : vector<8x128xf32>
    %58 = arith.addf %53, %57 : vector<8x128xf32>
    %cst_16 = arith.constant 5.000000e-01 : f32
    %59 = vector.broadcast %cst_16 : f32 to vector<8x128xf32>
    %60 = arith.mulf %59, %58 : vector<8x128xf32>
    %61 = math.tanh %60 : vector<8x128xf32>
    %cst_17 = arith.constant 5.000000e-01 : f32
    %62 = vector.broadcast %cst_17 : f32 to vector<8x128xf32>
    %63 = arith.mulf %62, %61 : vector<8x128xf32>
    %cst_18 = arith.constant 5.000000e-01 : f32
    %64 = vector.broadcast %cst_18 : f32 to vector<8x128xf32>
    %65 = arith.addf %63, %64 : vector<8x128xf32>
    %66 = vector.extract_strided_slice %65 {offsets = [0, 0], sizes = [1, 128], strides = [1, 1]} : vector<8x128xf32> to vector<1x128xf32>
    %67 = vector.extract_strided_slice %65 {offsets = [1, 0], sizes = [1, 128], strides = [1, 1]} : vector<8x128xf32> to vector<1x128xf32>
    %68 = vector.extract_strided_slice %65 {offsets = [2, 0], sizes = [1, 128], strides = [1, 1]} : vector<8x128xf32> to vector<1x128xf32>
    %69 = vector.extract_strided_slice %65 {offsets = [3, 0], sizes = [1, 128], strides = [1, 1]} : vector<8x128xf32> to vector<1x128xf32>
    %70 = vector.extract_strided_slice %65 {offsets = [4, 0], sizes = [1, 128], strides = [1, 1]} : vector<8x128xf32> to vector<1x128xf32>
    %c2 = arith.constant 2 : index
    %c0_19 = arith.constant 0 : index
    %c0_20 = arith.constant 0 : index
    %71 = vector.load %arg3[%c2, %c0_19, %c0_20] : memref<6x8x8xf32, #tpu.memory_space<vmem>>, vector<1x8x8xf32>
    %72 = vector.shape_cast %71 : vector<1x8x8xf32> to vector<8x8xf32>
    %c2_21 = arith.constant 2 : index
    %c0_22 = arith.constant 0 : index
    %c0_23 = arith.constant 0 : index
    %73 = vector.load %arg4[%c2_21, %c0_22, %c0_23] : memref<6x8x1xf32, #tpu.memory_space<vmem>>, vector<1x8x1xf32>
    %74 = vector.shape_cast %73 : vector<1x8x1xf32> to vector<8x1xf32>
    %75 = vector.extract_strided_slice %72 {offsets = [0, 0], sizes = [8, 1], strides = [1, 1]} : vector<8x8xf32> to vector<8x1xf32>
    %76 = vector.broadcast %75 : vector<8x1xf32> to vector<8x128xf32>
    %77 = vector.broadcast %66 : vector<1x128xf32> to vector<8x128xf32>
    %78 = arith.mulf %76, %77 : vector<8x128xf32>
    %79 = vector.broadcast %74 : vector<8x1xf32> to vector<8x128xf32>
    %80 = arith.addf %78, %79 : vector<8x128xf32>
    %81 = vector.extract_strided_slice %72 {offsets = [0, 1], sizes = [8, 1], strides = [1, 1]} : vector<8x8xf32> to vector<8x1xf32>
    %82 = vector.broadcast %81 : vector<8x1xf32> to vector<8x128xf32>
    %83 = vector.broadcast %67 : vector<1x128xf32> to vector<8x128xf32>
    %84 = arith.mulf %82, %83 : vector<8x128xf32>
    %85 = arith.addf %80, %84 : vector<8x128xf32>
    %86 = vector.extract_strided_slice %72 {offsets = [0, 2], sizes = [8, 1], strides = [1, 1]} : vector<8x8xf32> to vector<8x1xf32>
    %87 = vector.broadcast %86 : vector<8x1xf32> to vector<8x128xf32>
    %88 = vector.broadcast %68 : vector<1x128xf32> to vector<8x128xf32>
    %89 = arith.mulf %87, %88 : vector<8x128xf32>
    %90 = arith.addf %85, %89 : vector<8x128xf32>
    %91 = vector.extract_strided_slice %72 {offsets = [0, 3], sizes = [8, 1], strides = [1, 1]} : vector<8x8xf32> to vector<8x1xf32>
    %92 = vector.broadcast %91 : vector<8x1xf32> to vector<8x128xf32>
    %93 = vector.broadcast %69 : vector<1x128xf32> to vector<8x128xf32>
    %94 = arith.mulf %92, %93 : vector<8x128xf32>
    %95 = arith.addf %90, %94 : vector<8x128xf32>
    %96 = vector.extract_strided_slice %72 {offsets = [0, 4], sizes = [8, 1], strides = [1, 1]} : vector<8x8xf32> to vector<8x1xf32>
    %97 = vector.broadcast %96 : vector<8x1xf32> to vector<8x128xf32>
    %98 = vector.broadcast %70 : vector<1x128xf32> to vector<8x128xf32>
    %99 = arith.mulf %97, %98 : vector<8x128xf32>
    %100 = arith.addf %95, %99 : vector<8x128xf32>
    %cst_24 = arith.constant 5.000000e-01 : f32
    %101 = vector.broadcast %cst_24 : f32 to vector<8x128xf32>
    %102 = arith.mulf %101, %100 : vector<8x128xf32>
    %103 = math.tanh %102 : vector<8x128xf32>
    %cst_25 = arith.constant 5.000000e-01 : f32
    %104 = vector.broadcast %cst_25 : f32 to vector<8x128xf32>
    %105 = arith.mulf %104, %103 : vector<8x128xf32>
    %cst_26 = arith.constant 5.000000e-01 : f32
    %106 = vector.broadcast %cst_26 : f32 to vector<8x128xf32>
    %107 = arith.addf %105, %106 : vector<8x128xf32>
    %108 = vector.extract_strided_slice %107 {offsets = [0, 0], sizes = [1, 128], strides = [1, 1]} : vector<8x128xf32> to vector<1x128xf32>
    %109 = vector.extract_strided_slice %107 {offsets = [1, 0], sizes = [1, 128], strides = [1, 1]} : vector<8x128xf32> to vector<1x128xf32>
    %110 = vector.extract_strided_slice %107 {offsets = [2, 0], sizes = [1, 128], strides = [1, 1]} : vector<8x128xf32> to vector<1x128xf32>
    %111 = vector.extract_strided_slice %107 {offsets = [3, 0], sizes = [1, 128], strides = [1, 1]} : vector<8x128xf32> to vector<1x128xf32>
    %112 = vector.extract_strided_slice %107 {offsets = [4, 0], sizes = [1, 128], strides = [1, 1]} : vector<8x128xf32> to vector<1x128xf32>
    %c3 = arith.constant 3 : index
    %c0_27 = arith.constant 0 : index
    %c0_28 = arith.constant 0 : index
    %113 = vector.load %arg3[%c3, %c0_27, %c0_28] : memref<6x8x8xf32, #tpu.memory_space<vmem>>, vector<1x8x8xf32>
    %114 = vector.shape_cast %113 : vector<1x8x8xf32> to vector<8x8xf32>
    %c3_29 = arith.constant 3 : index
    %c0_30 = arith.constant 0 : index
    %c0_31 = arith.constant 0 : index
    %115 = vector.load %arg4[%c3_29, %c0_30, %c0_31] : memref<6x8x1xf32, #tpu.memory_space<vmem>>, vector<1x8x1xf32>
    %116 = vector.shape_cast %115 : vector<1x8x1xf32> to vector<8x1xf32>
    %117 = vector.extract_strided_slice %114 {offsets = [0, 0], sizes = [8, 1], strides = [1, 1]} : vector<8x8xf32> to vector<8x1xf32>
    %118 = vector.broadcast %117 : vector<8x1xf32> to vector<8x128xf32>
    %119 = vector.broadcast %108 : vector<1x128xf32> to vector<8x128xf32>
    %120 = arith.mulf %118, %119 : vector<8x128xf32>
    %121 = vector.broadcast %116 : vector<8x1xf32> to vector<8x128xf32>
    %122 = arith.addf %120, %121 : vector<8x128xf32>
    %123 = vector.extract_strided_slice %114 {offsets = [0, 1], sizes = [8, 1], strides = [1, 1]} : vector<8x8xf32> to vector<8x1xf32>
    %124 = vector.broadcast %123 : vector<8x1xf32> to vector<8x128xf32>
    %125 = vector.broadcast %109 : vector<1x128xf32> to vector<8x128xf32>
    %126 = arith.mulf %124, %125 : vector<8x128xf32>
    %127 = arith.addf %122, %126 : vector<8x128xf32>
    %128 = vector.extract_strided_slice %114 {offsets = [0, 2], sizes = [8, 1], strides = [1, 1]} : vector<8x8xf32> to vector<8x1xf32>
    %129 = vector.broadcast %128 : vector<8x1xf32> to vector<8x128xf32>
    %130 = vector.broadcast %110 : vector<1x128xf32> to vector<8x128xf32>
    %131 = arith.mulf %129, %130 : vector<8x128xf32>
    %132 = arith.addf %127, %131 : vector<8x128xf32>
    %133 = vector.extract_strided_slice %114 {offsets = [0, 3], sizes = [8, 1], strides = [1, 1]} : vector<8x8xf32> to vector<8x1xf32>
    %134 = vector.broadcast %133 : vector<8x1xf32> to vector<8x128xf32>
    %135 = vector.broadcast %111 : vector<1x128xf32> to vector<8x128xf32>
    %136 = arith.mulf %134, %135 : vector<8x128xf32>
    %137 = arith.addf %132, %136 : vector<8x128xf32>
    %138 = vector.extract_strided_slice %114 {offsets = [0, 4], sizes = [8, 1], strides = [1, 1]} : vector<8x8xf32> to vector<8x1xf32>
    %139 = vector.broadcast %138 : vector<8x1xf32> to vector<8x128xf32>
    %140 = vector.broadcast %112 : vector<1x128xf32> to vector<8x128xf32>
    %141 = arith.mulf %139, %140 : vector<8x128xf32>
    %142 = arith.addf %137, %141 : vector<8x128xf32>
    %cst_32 = arith.constant 5.000000e-01 : f32
    %143 = vector.broadcast %cst_32 : f32 to vector<8x128xf32>
    %144 = arith.mulf %143, %142 : vector<8x128xf32>
    %145 = math.tanh %144 : vector<8x128xf32>
    %cst_33 = arith.constant 5.000000e-01 : f32
    %146 = vector.broadcast %cst_33 : f32 to vector<8x128xf32>
    %147 = arith.mulf %146, %145 : vector<8x128xf32>
    %cst_34 = arith.constant 5.000000e-01 : f32
    %148 = vector.broadcast %cst_34 : f32 to vector<8x128xf32>
    %149 = arith.addf %147, %148 : vector<8x128xf32>
    %150 = vector.extract_strided_slice %149 {offsets = [0, 0], sizes = [1, 128], strides = [1, 1]} : vector<8x128xf32> to vector<1x128xf32>
    %151 = vector.extract_strided_slice %149 {offsets = [1, 0], sizes = [1, 128], strides = [1, 1]} : vector<8x128xf32> to vector<1x128xf32>
    %152 = vector.extract_strided_slice %149 {offsets = [2, 0], sizes = [1, 128], strides = [1, 1]} : vector<8x128xf32> to vector<1x128xf32>
    %153 = vector.extract_strided_slice %149 {offsets = [3, 0], sizes = [1, 128], strides = [1, 1]} : vector<8x128xf32> to vector<1x128xf32>
    %154 = vector.extract_strided_slice %149 {offsets = [4, 0], sizes = [1, 128], strides = [1, 1]} : vector<8x128xf32> to vector<1x128xf32>
    %c4 = arith.constant 4 : index
    %c0_35 = arith.constant 0 : index
    %c0_36 = arith.constant 0 : index
    %155 = vector.load %arg3[%c4, %c0_35, %c0_36] : memref<6x8x8xf32, #tpu.memory_space<vmem>>, vector<1x8x8xf32>
    %156 = vector.shape_cast %155 : vector<1x8x8xf32> to vector<8x8xf32>
    %c4_37 = arith.constant 4 : index
    %c0_38 = arith.constant 0 : index
    %c0_39 = arith.constant 0 : index
    %157 = vector.load %arg4[%c4_37, %c0_38, %c0_39] : memref<6x8x1xf32, #tpu.memory_space<vmem>>, vector<1x8x1xf32>
    %158 = vector.shape_cast %157 : vector<1x8x1xf32> to vector<8x1xf32>
    %159 = vector.extract_strided_slice %156 {offsets = [0, 0], sizes = [8, 1], strides = [1, 1]} : vector<8x8xf32> to vector<8x1xf32>
    %160 = vector.broadcast %159 : vector<8x1xf32> to vector<8x128xf32>
    %161 = vector.broadcast %150 : vector<1x128xf32> to vector<8x128xf32>
    %162 = arith.mulf %160, %161 : vector<8x128xf32>
    %163 = vector.broadcast %158 : vector<8x1xf32> to vector<8x128xf32>
    %164 = arith.addf %162, %163 : vector<8x128xf32>
    %165 = vector.extract_strided_slice %156 {offsets = [0, 1], sizes = [8, 1], strides = [1, 1]} : vector<8x8xf32> to vector<8x1xf32>
    %166 = vector.broadcast %165 : vector<8x1xf32> to vector<8x128xf32>
    %167 = vector.broadcast %151 : vector<1x128xf32> to vector<8x128xf32>
    %168 = arith.mulf %166, %167 : vector<8x128xf32>
    %169 = arith.addf %164, %168 : vector<8x128xf32>
    %170 = vector.extract_strided_slice %156 {offsets = [0, 2], sizes = [8, 1], strides = [1, 1]} : vector<8x8xf32> to vector<8x1xf32>
    %171 = vector.broadcast %170 : vector<8x1xf32> to vector<8x128xf32>
    %172 = vector.broadcast %152 : vector<1x128xf32> to vector<8x128xf32>
    %173 = arith.mulf %171, %172 : vector<8x128xf32>
    %174 = arith.addf %169, %173 : vector<8x128xf32>
    %175 = vector.extract_strided_slice %156 {offsets = [0, 3], sizes = [8, 1], strides = [1, 1]} : vector<8x8xf32> to vector<8x1xf32>
    %176 = vector.broadcast %175 : vector<8x1xf32> to vector<8x128xf32>
    %177 = vector.broadcast %153 : vector<1x128xf32> to vector<8x128xf32>
    %178 = arith.mulf %176, %177 : vector<8x128xf32>
    %179 = arith.addf %174, %178 : vector<8x128xf32>
    %180 = vector.extract_strided_slice %156 {offsets = [0, 4], sizes = [8, 1], strides = [1, 1]} : vector<8x8xf32> to vector<8x1xf32>
    %181 = vector.broadcast %180 : vector<8x1xf32> to vector<8x128xf32>
    %182 = vector.broadcast %154 : vector<1x128xf32> to vector<8x128xf32>
    %183 = arith.mulf %181, %182 : vector<8x128xf32>
    %184 = arith.addf %179, %183 : vector<8x128xf32>
    %cst_40 = arith.constant 5.000000e-01 : f32
    %185 = vector.broadcast %cst_40 : f32 to vector<8x128xf32>
    %186 = arith.mulf %185, %184 : vector<8x128xf32>
    %187 = math.tanh %186 : vector<8x128xf32>
    %cst_41 = arith.constant 5.000000e-01 : f32
    %188 = vector.broadcast %cst_41 : f32 to vector<8x128xf32>
    %189 = arith.mulf %188, %187 : vector<8x128xf32>
    %cst_42 = arith.constant 5.000000e-01 : f32
    %190 = vector.broadcast %cst_42 : f32 to vector<8x128xf32>
    %191 = arith.addf %189, %190 : vector<8x128xf32>
    %192 = vector.extract_strided_slice %191 {offsets = [0, 0], sizes = [1, 128], strides = [1, 1]} : vector<8x128xf32> to vector<1x128xf32>
    %193 = vector.extract_strided_slice %191 {offsets = [1, 0], sizes = [1, 128], strides = [1, 1]} : vector<8x128xf32> to vector<1x128xf32>
    %194 = vector.extract_strided_slice %191 {offsets = [2, 0], sizes = [1, 128], strides = [1, 1]} : vector<8x128xf32> to vector<1x128xf32>
    %195 = vector.extract_strided_slice %191 {offsets = [3, 0], sizes = [1, 128], strides = [1, 1]} : vector<8x128xf32> to vector<1x128xf32>
    %196 = vector.extract_strided_slice %191 {offsets = [4, 0], sizes = [1, 128], strides = [1, 1]} : vector<8x128xf32> to vector<1x128xf32>
    %c5 = arith.constant 5 : index
    %c0_43 = arith.constant 0 : index
    %c0_44 = arith.constant 0 : index
    %197 = vector.load %arg3[%c5, %c0_43, %c0_44] : memref<6x8x8xf32, #tpu.memory_space<vmem>>, vector<1x8x8xf32>
    %198 = vector.shape_cast %197 : vector<1x8x8xf32> to vector<8x8xf32>
    %c5_45 = arith.constant 5 : index
    %c0_46 = arith.constant 0 : index
    %c0_47 = arith.constant 0 : index
    %199 = vector.load %arg4[%c5_45, %c0_46, %c0_47] : memref<6x8x1xf32, #tpu.memory_space<vmem>>, vector<1x8x1xf32>
    %200 = vector.shape_cast %199 : vector<1x8x1xf32> to vector<8x1xf32>
    %201 = vector.extract_strided_slice %198 {offsets = [0, 0], sizes = [8, 1], strides = [1, 1]} : vector<8x8xf32> to vector<8x1xf32>
    %202 = vector.broadcast %201 : vector<8x1xf32> to vector<8x128xf32>
    %203 = vector.broadcast %192 : vector<1x128xf32> to vector<8x128xf32>
    %204 = arith.mulf %202, %203 : vector<8x128xf32>
    %205 = vector.broadcast %200 : vector<8x1xf32> to vector<8x128xf32>
    %206 = arith.addf %204, %205 : vector<8x128xf32>
    %207 = vector.extract_strided_slice %198 {offsets = [0, 1], sizes = [8, 1], strides = [1, 1]} : vector<8x8xf32> to vector<8x1xf32>
    %208 = vector.broadcast %207 : vector<8x1xf32> to vector<8x128xf32>
    %209 = vector.broadcast %193 : vector<1x128xf32> to vector<8x128xf32>
    %210 = arith.mulf %208, %209 : vector<8x128xf32>
    %211 = arith.addf %206, %210 : vector<8x128xf32>
    %212 = vector.extract_strided_slice %198 {offsets = [0, 2], sizes = [8, 1], strides = [1, 1]} : vector<8x8xf32> to vector<8x1xf32>
    %213 = vector.broadcast %212 : vector<8x1xf32> to vector<8x128xf32>
    %214 = vector.broadcast %194 : vector<1x128xf32> to vector<8x128xf32>
    %215 = arith.mulf %213, %214 : vector<8x128xf32>
    %216 = arith.addf %211, %215 : vector<8x128xf32>
    %217 = vector.extract_strided_slice %198 {offsets = [0, 3], sizes = [8, 1], strides = [1, 1]} : vector<8x8xf32> to vector<8x1xf32>
    %218 = vector.broadcast %217 : vector<8x1xf32> to vector<8x128xf32>
    %219 = vector.broadcast %195 : vector<1x128xf32> to vector<8x128xf32>
    %220 = arith.mulf %218, %219 : vector<8x128xf32>
    %221 = arith.addf %216, %220 : vector<8x128xf32>
    %222 = vector.extract_strided_slice %198 {offsets = [0, 4], sizes = [8, 1], strides = [1, 1]} : vector<8x8xf32> to vector<8x1xf32>
    %223 = vector.broadcast %222 : vector<8x1xf32> to vector<8x128xf32>
    %224 = vector.broadcast %196 : vector<1x128xf32> to vector<8x128xf32>
    %225 = arith.mulf %223, %224 : vector<8x128xf32>
    %226 = arith.addf %221, %225 : vector<8x128xf32>
    %227 = vector.extract_strided_slice %226 {offsets = [0, 0], sizes = [1, 128], strides = [1, 1]} : vector<8x128xf32> to vector<1x128xf32>
    %c0_48 = arith.constant 0 : index
    %c0_49 = arith.constant 0 : index
    %228 = vector.load %arg5[%c0_48, %c0_49] : memref<1x128xf32, #tpu.memory_space<vmem>>, vector<1x128xf32>
    tpu.vector_store %arg5[%c0_48, %c0_49], %227 {strides = array<i32>} : memref<1x128xf32, #tpu.memory_space<vmem>>, vector<1x128xf32>,
    return
  }
  func.func @transform_0(%arg0: i32) -> (i32, i32) {
    %c0_i32 = arith.constant 0 : i32
    %c0_i32_0 = arith.constant 0 : i32
    return %c0_i32, %arg0 : i32, i32
  }
  func.func @transform_1(%arg0: i32) -> (i32, i32) {
    %c0_i32 = arith.constant 0 : i32
    %c0_i32_0 = arith.constant 0 : i32
    return %c0_i32, %arg0 : i32, i32
  }
  func.func @transform_2(%arg0: i32) -> (i32, i32, i32) {
    %c0_i32 = arith.constant 0 : i32
    %c0_i32_0 = arith.constant 0 : i32
    %c0_i32_1 = arith.constant 0 : i32
    %c0_i32_2 = arith.constant 0 : i32
    return %c0_i32, %c0_i32_0, %c0_i32_1 : i32, i32, i32
  }
  func.func @transform_3(%arg0: i32) -> (i32, i32, i32) {
    %c0_i32 = arith.constant 0 : i32
    %c0_i32_0 = arith.constant 0 : i32
    %c0_i32_1 = arith.constant 0 : i32
    %c0_i32_2 = arith.constant 0 : i32
    return %c0_i32, %c0_i32_0, %c0_i32_1 : i32, i32, i32
  }
  func.func @transform_4(%arg0: i32) -> (i32, i32) {
    %c0_i32 = arith.constant 0 : i32
    %c0_i32_0 = arith.constant 0 : i32
    return %c0_i32, %arg0 : i32, i32
  }
}

</mosaic_0001>

<llo_original>
// kernel: mlp_net_forward.1
$region0: #{mlp_net_forward.1}
  #allocation0 [shape = 'u32[]', space=smem, size = 0x4, offset = 0x4, fixed_abs, tag = 'smem constant byte address 0x4 - core index']
  #allocation1 [shape = 'u32[72,128]{1,0:T(1,128)}', space=vmem, size = 0x9000, scoped, tag = 'internal scratch']
  %s0 = inlined_call_operand.vmem [shape: f32[1,128], index: 0, kind: input, shape index: {}]
  %s1 = inlined_call_operand.vmem [shape: f32[1,128], index: 1, kind: input, shape index: {}]
  %s2 = inlined_call_operand.vmem [shape: f32[6,8,8], index: 2, kind: input, shape index: {}]
  %s3 = inlined_call_operand.vmem [shape: f32[6,8,1], index: 3, kind: input, shape index: {}]
  %s4 = inlined_call_operand.vmem [shape: f32[1,128], index: 4, kind: output, shape index: {}]
  %s5 = sld [smem:[#allocation0]]
  $region26: #{mlp_net_forward.1} parent=0
    _
  %s7 = ssub.s32 1, %s5
  %s8 = scalar_select 0, %s7, %s5
  // Predicated region
  $region2: #{mlp_net_forward.1} parent=0 // pred_check
    _
  $region3: #{mlp_net_forward.1} parent=0 // pred_check_branch
    %10 = sbr.rel (0) target = $region5
  $region4: #{mlp_net_forward.1} parent=0 // pred_region
    _
  $region5: #{mlp_net_forward.1} parent=0 // pred_fallthru
    _
  // Predicated region
  $region6: #{mlp_net_forward.1} parent=0 // pred_check
    _
  $region7: #{mlp_net_forward.1} parent=0 // pred_check_branch
    %12 = sbr.rel (0) target = $region9
  $region8: #{mlp_net_forward.1} parent=0 // pred_region
    _
  $region9: #{mlp_net_forward.1} parent=0 // pred_fallthru
    _
  // Predicated region
  $region10: #{mlp_net_forward.1} parent=0 // pred_check
    _
  $region11: #{mlp_net_forward.1} parent=0 // pred_check_branch
    %14 = sbr.rel (0) target = $region13
  $region12: #{mlp_net_forward.1} parent=0 // pred_region
    _
  $region13: #{mlp_net_forward.1} parent=0 // pred_fallthru
    _
  // Predicated region
  $region14: #{mlp_net_forward.1} parent=0 // pred_check
    _
  $region15: #{mlp_net_forward.1} parent=0 // pred_check_branch
    %16 = sbr.rel (0) target = $region17
  $region16: #{mlp_net_forward.1} parent=0 // pred_region
    _
  $region17: #{mlp_net_forward.1} parent=0 // pred_fallthru
    _
  %v17 = vld [vmem:[%s0] sm:$0x1]
  %v18 = vld [vmem:[%s1] sm:$0x1]
  %v19 = vld [vmem:[%s2] sm:$0xff]
  %v20 = vld [vmem:[%s3] sm:$0xff]
  %22 = vset.pattern.permute.xlu0 0
  %23 = vperm.xlu0 %22, %v19
  %v24 = vpop.permute.xlu0 %23
  %v27 = vperm.slane %v17, 0
  %v29 = vmul.f32 %v24, %v27
  %31 = vset.pattern.permute.xlu0 0
  %32 = vperm.xlu0 %31, %v20
  %v33 = vpop.permute.xlu0 %32
  %v35 = vadd.f32 %v29, %v33
  %36 = vset.pattern.permute.xlu0 1
  %37 = vperm.xlu0 %36, %v19
  %v38 = vpop.permute.xlu0 %37
  %v41 = vperm.slane %v18, 0
  %v43 = vmul.f32 %v38, %v41
  %v44 = vadd.f32 %v35, %v43
  %v45 = vmul.f32 %v44, 0.5
  %v46 = vtanh.pop %v45
  %v47 = vmul.f32 %v46, 0.5
  %v48 = vadd.f32 %v47, 0.5
  %s49 = scalar_lea.vmem %s2, 8
  %v50 = vld [vmem:[%s49] sm:$0xff]
  %s51 = scalar_lea.vmem %s3, 8
  %v52 = vld [vmem:[%s51] sm:$0xff]
  %54 = vset.pattern.permute.xlu0 0
  %55 = vperm.xlu0 %54, %v50
  %v56 = vpop.permute.xlu0 %55
  %v58 = vperm.slane %v48, 0
  %v59 = vmul.f32 %v56, %v58
  %61 = vset.pattern.permute.xlu0 0
  %62 = vperm.xlu0 %61, %v52
  %v63 = vpop.permute.xlu0 %62
  %v65 = vadd.f32 %v59, %v63
  %66 = vset.pattern.permute.xlu0 1
  %67 = vperm.xlu0 %66, %v50
  %v68 = vpop.permute.xlu0 %67
  %v70 = vperm.slane %v48, 1
  %v71 = vmul.f32 %v68, %v70
  %v72 = vadd.f32 %v65, %v71
  %73 = vset.pattern.permute.xlu0 2
  %74 = vperm.xlu0 %73, %v50
  %v75 = vpop.permute.xlu0 %74
  %v77 = vperm.slane %v48, 2
  %v78 = vmul.f32 %v75, %v77
  %v79 = vadd.f32 %v72, %v78
  %80 = vset.pattern.permute.xlu0 3
  %81 = vperm.xlu0 %80, %v50
  %v82 = vpop.permute.xlu0 %81
  %v84 = vperm.slane %v48, 3
  %v85 = vmul.f32 %v82, %v84
  %v86 = vadd.f32 %v79, %v85
  %87 = vset.pattern.permute.xlu0 4
  %88 = vperm.xlu0 %87, %v50
  %v89 = vpop.permute.xlu0 %88
  %v91 = vperm.slane %v48, 4
  %v92 = vmul.f32 %v89, %v91
  %v93 = vadd.f32 %v86, %v92
  %v94 = vmul.f32 %v93, 0.5
  %v95 = vtanh.pop %v94
  %v96 = vmul.f32 %v95, 0.5
  %v97 = vadd.f32 %v96, 0.5
  %s98 = scalar_lea.vmem %s2, 16
  %v99 = vld [vmem:[%s98] sm:$0xff]
  %s100 = scalar_lea.vmem %s3, 16
  %v101 = vld [vmem:[%s100] sm:$0xff]
  %103 = vset.pattern.permute.xlu0 0
  %104 = vperm.xlu0 %103, %v99
  %v105 = vpop.permute.xlu0 %104
  %v107 = vperm.slane %v97, 0
  %v108 = vmul.f32 %v105, %v107
  %110 = vset.pattern.permute.xlu0 0
  %111 = vperm.xlu0 %110, %v101
  %v112 = vpop.permute.xlu0 %111
  %v114 = vadd.f32 %v108, %v112
  %115 = vset.pattern.permute.xlu0 1
  %116 = vperm.xlu0 %115, %v99
  %v117 = vpop.permute.xlu0 %116
  %v119 = vperm.slane %v97, 1
  %v120 = vmul.f32 %v117, %v119
  %v121 = vadd.f32 %v114, %v120
  %122 = vset.pattern.permute.xlu0 2
  %123 = vperm.xlu0 %122, %v99
  %v124 = vpop.permute.xlu0 %123
  %v126 = vperm.slane %v97, 2
  %v127 = vmul.f32 %v124, %v126
  %v128 = vadd.f32 %v121, %v127
  %129 = vset.pattern.permute.xlu0 3
  %130 = vperm.xlu0 %129, %v99
  %v131 = vpop.permute.xlu0 %130
  %v133 = vperm.slane %v97, 3
  %v134 = vmul.f32 %v131, %v133
  %v135 = vadd.f32 %v128, %v134
  %136 = vset.pattern.permute.xlu0 4
  %137 = vperm.xlu0 %136, %v99
  %v138 = vpop.permute.xlu0 %137
  %v140 = vperm.slane %v97, 4
  %v141 = vmul.f32 %v138, %v140
  %v142 = vadd.f32 %v135, %v141
  %v143 = vmul.f32 %v142, 0.5
  %v144 = vtanh.pop %v143
  %v145 = vmul.f32 %v144, 0.5
  %v146 = vadd.f32 %v145, 0.5
  %s147 = scalar_lea.vmem %s2, 24
  %v148 = vld [vmem:[%s147] sm:$0xff]
  %s149 = scalar_lea.vmem %s3, 24
  %v150 = vld [vmem:[%s149] sm:$0xff]
  %152 = vset.pattern.permute.xlu0 0
  %153 = vperm.xlu0 %152, %v148
  %v154 = vpop.permute.xlu0 %153
  %v156 = vperm.slane %v146, 0
  %v157 = vmul.f32 %v154, %v156
  %159 = vset.pattern.permute.xlu0 0
  %160 = vperm.xlu0 %159, %v150
  %v161 = vpop.permute.xlu0 %160
  %v163 = vadd.f32 %v157, %v161
  %164 = vset.pattern.permute.xlu0 1
  %165 = vperm.xlu0 %164, %v148
  %v166 = vpop.permute.xlu0 %165
  %v168 = vperm.slane %v146, 1
  %v169 = vmul.f32 %v166, %v168
  %v170 = vadd.f32 %v163, %v169
  %171 = vset.pattern.permute.xlu0 2
  %172 = vperm.xlu0 %171, %v148
  %v173 = vpop.permute.xlu0 %172
  %v175 = vperm.slane %v146, 2
  %v176 = vmul.f32 %v173, %v175
  %v177 = vadd.f32 %v170, %v176
  %178 = vset.pattern.permute.xlu0 3
  %179 = vperm.xlu0 %178, %v148
  %v180 = vpop.permute.xlu0 %179
  %v182 = vperm.slane %v146, 3
  %v183 = vmul.f32 %v180, %v182
  %v184 = vadd.f32 %v177, %v183
  %185 = vset.pattern.permute.xlu0 4
  %186 = vperm.xlu0 %185, %v148
  %v187 = vpop.permute.xlu0 %186
  %v189 = vperm.slane %v146, 4
  %v190 = vmul.f32 %v187, %v189
  %v191 = vadd.f32 %v184, %v190
  %v192 = vmul.f32 %v191, 0.5
  %v193 = vtanh.pop %v192
  %v194 = vmul.f32 %v193, 0.5
  %v195 = vadd.f32 %v194, 0.5
  %s196 = scalar_lea.vmem %s2, 32
  %v197 = vld [vmem:[%s196] sm:$0xff]
  %s198 = scalar_lea.vmem %s3, 32
  %v199 = vld [vmem:[%s198] sm:$0xff]
  %201 = vset.pattern.permute.xlu0 0
  %202 = vperm.xlu0 %201, %v197
  %v203 = vpop.permute.xlu0 %202
  %v205 = vperm.slane %v195, 0
  %v206 = vmul.f32 %v203, %v205
  %208 = vset.pattern.permute.xlu0 0
  %209 = vperm.xlu0 %208, %v199
  %v210 = vpop.permute.xlu0 %209
  %v212 = vadd.f32 %v206, %v210
  %213 = vset.pattern.permute.xlu0 1
  %214 = vperm.xlu0 %213, %v197
  %v215 = vpop.permute.xlu0 %214
  %v217 = vperm.slane %v195, 1
  %v218 = vmul.f32 %v215, %v217
  %v219 = vadd.f32 %v212, %v218
  %220 = vset.pattern.permute.xlu0 2
  %221 = vperm.xlu0 %220, %v197
  %v222 = vpop.permute.xlu0 %221
  %v224 = vperm.slane %v195, 2
  %v225 = vmul.f32 %v222, %v224
  %v226 = vadd.f32 %v219, %v225
  %227 = vset.pattern.permute.xlu0 3
  %228 = vperm.xlu0 %227, %v197
  %v229 = vpop.permute.xlu0 %228
  %v231 = vperm.slane %v195, 3
  %v232 = vmul.f32 %v229, %v231
  %v233 = vadd.f32 %v226, %v232
  %234 = vset.pattern.permute.xlu0 4
  %235 = vperm.xlu0 %234, %v197
  %v236 = vpop.permute.xlu0 %235
  %v238 = vperm.slane %v195, 4
  %v239 = vmul.f32 %v236, %v238
  %v240 = vadd.f32 %v233, %v239
  %v241 = vmul.f32 %v240, 0.5
  %v242 = vtanh.pop %v241
  %v243 = vmul.f32 %v242, 0.5
  %v244 = vadd.f32 %v243, 0.5
  %s245 = scalar_lea.vmem %s2, 40
  %v246 = vld [vmem:[%s245] sm:$0xff]
  %s247 = scalar_lea.vmem %s3, 40
  %v248 = vld [vmem:[%s247] sm:$0xff]
  %250 = vset.pattern.permute.xlu0 0
  %251 = vperm.xlu0 %250, %v246
  %v252 = vpop.permute.xlu0 %251
  %v254 = vperm.slane %v244, 0
  %v255 = vmul.f32 %v252, %v254
  %257 = vset.pattern.permute.xlu0 0
  %258 = vperm.xlu0 %257, %v248
  %v259 = vpop.permute.xlu0 %258
  %v261 = vadd.f32 %v255, %v259
  %262 = vset.pattern.permute.xlu0 1
  %263 = vperm.xlu0 %262, %v246
  %v264 = vpop.permute.xlu0 %263
  %v266 = vperm.slane %v244, 1
  %v267 = vmul.f32 %v264, %v266
  %v268 = vadd.f32 %v261, %v267
  %269 = vset.pattern.permute.xlu0 2
  %270 = vperm.xlu0 %269, %v246
  %v271 = vpop.permute.xlu0 %270
  %v273 = vperm.slane %v244, 2
  %v274 = vmul.f32 %v271, %v273
  %v275 = vadd.f32 %v268, %v274
  %276 = vset.pattern.permute.xlu0 3
  %277 = vperm.xlu0 %276, %v246
  %v278 = vpop.permute.xlu0 %277
  %v280 = vperm.slane %v244, 3
  %v281 = vmul.f32 %v278, %v280
  %v282 = vadd.f32 %v275, %v281
  %283 = vset.pattern.permute.xlu0 4
  %284 = vperm.xlu0 %283, %v246
  %v285 = vpop.permute.xlu0 %284
  %v287 = vperm.slane %v244, 4
  %v288 = vmul.f32 %v285, %v287
  %v289 = vadd.f32 %v282, %v288
  %290 = vst [vmem:[%s4] sm:$0x1] %v289
  // Predicated region
  $region18: #{mlp_net_forward.1} parent=0 // pred_check
    _
  $region19: #{mlp_net_forward.1} parent=0 // pred_check_branch
    %292 = sbr.rel (0) target = $region21
  $region20: #{mlp_net_forward.1} parent=0 // pred_region
    _
  $region21: #{mlp_net_forward.1} parent=0 // pred_fallthru
    _
  // Predicated region
  $region22: #{mlp_net_forward.1} parent=0 // pred_check
    _
  $region23: #{mlp_net_forward.1} parent=0 // pred_check_branch
    %294 = sbr.rel (0) target = $region25
  $region24: #{mlp_net_forward.1} parent=0 // pred_region
    _
  $region25: #{mlp_net_forward.1} parent=0 // pred_fallthru
    _

</llo_original>
